<compile_context>
chip_gen: v6e
topology: v6e:2x2x1
jax: 0.10.0
libtpu: 0.0.40
codegen_flags: <defaults>
</compile_context>

<pallas_src>
from functools import partial
from types import SimpleNamespace

import jax
import jax.numpy as jnp
from jax.experimental import pallas as pl
from jax.experimental.pallas import tpu as pltpu


def _repr_net_kernel(*refs, ks, use_scratch):
    # refs = [x_0, (P_0), x_1, (P_1), ..., out] (+ [acc] when use_scratch).
    # P_l is omitted whenever k_l == 1 (identity pool).
    if use_scratch:
        out_ref, acc_ref = refs[-2], refs[-1]
    else:
        out_ref = refs[-1]
        acc_ref = out_ref                      # accumulate straight into out
    idx = 0
    for l, k in enumerate(ks):
        x_ref = refs[idx]
        idx += 1
        if k == 1:
            # AvgPool2d(1) is the identity: just add the block on the VPU.
            contrib = x_ref[...].astype(acc_ref.dtype)
        else:
            p_ref = refs[idx]
            idx += 1
            # (TB, H*W) @ (H*W, Ho*Wo) -> (TB, Ho*Wo), f32 accumulation on MXU.
            contrib = jnp.dot(
                x_ref[...], p_ref[...],
                preferred_element_type=jnp.float32).astype(acc_ref.dtype)
        if l == 0:
            acc_ref[...] = contrib
        else:
            acc_ref[...] += contrib
    if use_scratch:
        out_ref[...] = acc_ref[...].astype(out_ref.dtype)


def _pool_matrix(H, W, Ho, Wo, k, dtype):
    """P[(h*W+w), (ho*Wo+wo)] = 1/k^2 if h//k==ho and w//k==wo else 0."""
    hw = jnp.arange(H * W, dtype=jnp.int32)
    h, w = hw // W, hw % W
    o = jnp.arange(Ho * Wo, dtype=jnp.int32)
    oh, ow = o // Wo, o % Wo
    mask = (h[:, None] // k == oh[None, :]) & (w[:, None] // k == ow[None, :])
    # 1/k^2 is a power of two -> exact in bf16/f32.
    return (mask.astype(jnp.float32) / float(k * k)).astype(dtype)


def _round_up(x, m):
    return -(-x // m) * m


def _vmem_budget():
    """(tiling budget, vmem_limit_bytes) derived from the actual generation."""
    try:
        cap = int(pltpu.get_tpu_info().vmem_capacity_bytes)
    except Exception:
        cap = 64 * 1024 * 1024  # conservative: v7x per-TensorCore size
    return int(0.70 * cap), int(0.80 * cap)


def _pick_tb(BC, hw_list, ks, howo, elem_bytes, budget_bytes, use_scratch):
    """Largest batch-channel block whose resident VMEM footprint fits budget."""
    rp = lambda r: _round_up(r, 8)      # sublane padding
    cp = lambda c: _round_up(c, 128)    # lane padding

    # Fixed (TB-independent) footprint: pool matrices, single-buffered.
    fixed = sum(rp(hw) * cp(howo) * elem_bytes
                for hw, k in zip(hw_list, ks) if k > 1)
    if fixed > budget_bytes:
        # TODO(synk): K-tiled / separable-pooling fallback path.
        raise ValueError(
            f"ReprNet pool matrices need {fixed} B of VMEM but the budget is "
            f"{budget_bytes} B; a K-tiled/separable fallback is required.")

    def per_tb(tb):
        t = 2 * rp(tb) * cp(howo) * elem_bytes          # output double-buffer
        if use_scratch:
            t += rp(tb) * cp(howo) * 4                  # f32 acc scratch
        for hw in hw_list:
            t += 2 * rp(tb) * cp(hw) * elem_bytes       # x double-buffer
        return t

    # Fat blocks (fewer grid steps, long DMAs); multiple of 8; capped so the
    # grid has >= 2 steps whenever BC allows it (keeps both v7x TCs busy).
    tb = min(2048, _round_up(BC, 8))
    if BC > 8:
        tb = min(tb, _round_up(-(-BC // 2), 8))
    tb = max(8, tb)
    while tb > 8 and fixed + per_tb(tb) > budget_bytes:
        tb = max(8, _round_up(tb // 2, 8))
    if fixed + per_tb(tb) > budget_bytes:
        raise ValueError(
            "ReprNet blocks do not fit in VMEM even at TB=8; reduce Ho*Wo or "
            "stream a narrower dtype (e.g. bf16).")
    return tb


def repr_net_forward(xs, max_level):
    """xs: list of NCHW arrays, xs[i] shape (N, C, Ho*k_i, Wo*k_i)."""
    num_levels = len(xs)
    N, C = xs[0].shape[0], xs[0].shape[1]
    BC = N * C
    ks = [2 ** (max_level - i - 1) for i in range(num_levels)]
    Ho, Wo = xs[0].shape[2] // ks[0], xs[0].shape[3] // ks[0]
    HoWo = Ho * Wo
    dtype = xs[0].dtype
    elem_bytes = jnp.dtype(dtype).itemsize
    use_scratch = dtype != jnp.float32          # f32 out: accumulate in out_ref

    hw_list = [x.shape[2] * x.shape[3] for x in xs]
    budget_bytes, vmem_limit = _vmem_budget()
    TB = _pick_tb(BC, hw_list, ks, HoWo, elem_bytes, budget_bytes, use_scratch)
    grid = (pl.cdiv(BC, TB),)

    # Flatten each level; reshape (N, C, H, W) -> (N*C, H*W) is free/contiguous.
    args = []
    total_bytes = BC * HoWo * elem_bytes        # output writeback
    total_flops = 0
    for x, k, HW in zip(xs, ks, hw_list):
        H, W = x.shape[2], x.shape[3]
        assert H == Ho * k and W == Wo * k, "levels must pool to the same size"
        args.append(x.reshape(BC, HW))
        total_bytes += BC * HW * elem_bytes
        if k > 1:
            args.append(_pool_matrix(H, W, Ho, Wo, k, dtype))
            total_bytes += HW * HoWo * elem_bytes
            total_flops += 2 * BC * HW * HoWo

    scratch_shapes = []
    if use_scratch:
        scratch_shapes.append(pltpu.VMEM((TB, HoWo), jnp.float32))

    def _build_and_call(single_buffer_consts):
        in_specs = []
        for k, HW in zip(ks, hw_list):
            in_specs.append(pl.BlockSpec((TB, HW), lambda i: (i, 0)))
            if k > 1:
                if single_buffer_consts:
                    # Grid-invariant pool matrix: one buffer is enough.
                    in_specs.append(pl.BlockSpec((HW, HoWo), lambda i: (0, 0),
                                                 pipeline_mode=pl.Buffered(1)))
                else:
                    in_specs.append(pl.BlockSpec((HW, HoWo), lambda i: (0, 0)))
        return pl.pallas_call(
            partial(_repr_net_kernel, ks=tuple(ks), use_scratch=use_scratch),
            out_shape=jax.ShapeDtypeStruct((BC, HoWo), dtype),
            grid=grid,
            in_specs=in_specs,
            out_specs=pl.BlockSpec((TB, HoWo), lambda i: (i, 0)),
            scratch_shapes=scratch_shapes,
            compiler_params=pltpu.CompilerParams(
                dimension_semantics=("parallel",),
                vmem_limit_bytes=vmem_limit,
            ),
            cost_estimate=pl.CostEstimate(
                flops=total_flops,
                transcendentals=0,
                bytes_accessed=total_bytes,
            ),
        )(*args)

    try:
        out = _build_and_call(True)
    except Exception:
        # This JAX/Mosaic build does not accept pipeline_mode=Buffered(1);
        # fall back to default double-buffered pool-matrix specs.
        out = _build_and_call(False)
    return out.reshape(N, C, Ho, Wo)


if __name__ == "__main__":
    cfg = SimpleNamespace(num_levels=3, max_level=3)
    N, C, S_out = 2, 4, 4

    key = jax.random.PRNGKey(0)
    xs = []
    for i in range(cfg.num_levels):
        k = 2 ** (cfg.max_level - i - 1)
        key, sub = jax.random.split(key)
        xs.append(jax.random.normal(sub, (N, C, S_out * k, S_out * k), jnp.float32))

    out = repr_net_forward(xs, cfg.max_level)
    out = jax.block_until_ready(out)

    # Pure-JAX reference (AvgPool2d == block mean, then sum over levels).
    ref = jnp.zeros((N, C, S_out, S_out), jnp.float32)
    for i, x in enumerate(xs):
        k = 2 ** (cfg.max_level - i - 1)
        ref = ref + x.reshape(N, C, S_out, k, S_out, k).mean(axis=(3, 5))

    assert out.shape == (N, C, S_out, S_out)
    assert jnp.allclose(out, ref, atol=1e-4, rtol=1e-4), "Pallas output mismatch vs reference"

    print("KERNEL_OK")
</pallas_src>

<mosaic_0001>
module attributes {stable_mosaic.version = 11 : i64} {
  func.func @_repr_net_kernel(%arg0: i32, %arg1: memref<8x256xf32, #tpu.memory_space<vmem>>, %arg2: memref<256x16xf32, #tpu.memory_space<vmem>>, %arg3: memref<8x64xf32, #tpu.memory_space<vmem>>, %arg4: memref<64x16xf32, #tpu.memory_space<vmem>>, %arg5: memref<8x16xf32, #tpu.memory_space<vmem>>, %arg6: memref<8x16xf32, #tpu.memory_space<vmem>>) attributes {dimension_semantics = [#tpu.dimension_semantics<parallel>], iteration_bounds = array<i64: 1>, scalar_prefetch = 0 : i64, scratch_operands = 0 : i64, tpu.core_type = #tpu.core_type<tc>, window_params = [{transform_indices = @transform_0, window_bounds = array<i64: 8, 256>}, {pipeline_mode = #tpu.pipeline_mode<synchronous>, transform_indices = @transform_1, window_bounds = array<i64: 256, 16>}, {transform_indices = @transform_2, window_bounds = array<i64: 8, 64>}, {pipeline_mode = #tpu.pipeline_mode<synchronous>, transform_indices = @transform_3, window_bounds = array<i64: 64, 16>}, {transform_indices = @transform_4, window_bounds = array<i64: 8, 16>}, {transform_indices = @transform_5, window_bounds = array<i64: 8, 16>}]} {
    %c0 = arith.constant 0 : index
    %c0_0 = arith.constant 0 : index
    %0 = vector.load %arg1[%c0, %c0_0] : memref<8x256xf32, #tpu.memory_space<vmem>>, vector<8x256xf32>
    %c0_1 = arith.constant 0 : index
    %c0_2 = arith.constant 0 : index
    %1 = vector.load %arg2[%c0_1, %c0_2] : memref<256x16xf32, #tpu.memory_space<vmem>>, vector<256x16xf32>
    %cst = arith.constant dense<0.000000e+00> : vector<8x16xf32>
    %2 = tpu.matmul %0, %1, %cst {dimension_numbers = #tpu.dot_dimension_numbers<[1], [0], [0], [1], [0, 0, 1, 1], [], []>} : vector<8x256xf32>, vector<256x16xf32>, vector<8x16xf32> -> vector<8x16xf32>
    %c0_3 = arith.constant 0 : index
    %c0_4 = arith.constant 0 : index
    %3 = vector.load %arg6[%c0_3, %c0_4] : memref<8x16xf32, #tpu.memory_space<vmem>>, vector<8x16xf32>
    tpu.vector_store %arg6[%c0_3, %c0_4], %2 {strides = array<i32>} : memref<8x16xf32, #tpu.memory_space<vmem>>, vector<8x16xf32>,
    %c0_5 = arith.constant 0 : index
    %c0_6 = arith.constant 0 : index
    %4 = vector.load %arg3[%c0_5, %c0_6] : memref<8x64xf32, #tpu.memory_space<vmem>>, vector<8x64xf32>
    %c0_7 = arith.constant 0 : index
    %c0_8 = arith.constant 0 : index
    %5 = vector.load %arg4[%c0_7, %c0_8] : memref<64x16xf32, #tpu.memory_space<vmem>>, vector<64x16xf32>
    %cst_9 = arith.constant dense<0.000000e+00> : vector<8x16xf32>
    %6 = tpu.matmul %4, %5, %cst_9 {dimension_numbers = #tpu.dot_dimension_numbers<[1], [0], [0], [1], [0, 0, 1, 1], [], []>} : vector<8x64xf32>, vector<64x16xf32>, vector<8x16xf32> -> vector<8x16xf32>
    %c0_10 = arith.constant 0 : index
    %c0_11 = arith.constant 0 : index
    %7 = vector.load %arg6[%c0_10, %c0_11] : memref<8x16xf32, #tpu.memory_space<vmem>>, vector<8x16xf32>
    %8 = arith.addf %7, %6 : vector<8x16xf32>
    %c0_12 = arith.constant 0 : index
    %c0_13 = arith.constant 0 : index
    %9 = vector.load %arg6[%c0_12, %c0_13] : memref<8x16xf32, #tpu.memory_space<vmem>>, vector<8x16xf32>
    tpu.vector_store %arg6[%c0_12, %c0_13], %8 {strides = array<i32>} : memref<8x16xf32, #tpu.memory_space<vmem>>, vector<8x16xf32>,
    %c0_14 = arith.constant 0 : index
    %c0_15 = arith.constant 0 : index
    %10 = vector.load %arg5[%c0_14, %c0_15] : memref<8x16xf32, #tpu.memory_space<vmem>>, vector<8x16xf32>
    %c0_16 = arith.constant 0 : index
    %c0_17 = arith.constant 0 : index
    %11 = vector.load %arg6[%c0_16, %c0_17] : memref<8x16xf32, #tpu.memory_space<vmem>>, vector<8x16xf32>
    %12 = arith.addf %11, %10 : vector<8x16xf32>
    %c0_18 = arith.constant 0 : index
    %c0_19 = arith.constant 0 : index
    %13 = vector.load %arg6[%c0_18, %c0_19] : memref<8x16xf32, #tpu.memory_space<vmem>>, vector<8x16xf32>
    tpu.vector_store %arg6[%c0_18, %c0_19], %12 {strides = array<i32>} : memref<8x16xf32, #tpu.memory_space<vmem>>, vector<8x16xf32>,
    return
  }
  func.func @transform_0(%arg0: i32) -> (i32, i32) {
    %c0_i32 = arith.constant 0 : i32
    %c0_i32_0 = arith.constant 0 : i32
    return %arg0, %c0_i32 : i32, i32
  }
  func.func @transform_1(%arg0: i32) -> (i32, i32) {
    %c0_i32 = arith.constant 0 : i32
    %c0_i32_0 = arith.constant 0 : i32
    %c0_i32_1 = arith.constant 0 : i32
    return %c0_i32, %c0_i32_0 : i32, i32
  }
  func.func @transform_2(%arg0: i32) -> (i32, i32) {
    %c0_i32 = arith.constant 0 : i32
    %c0_i32_0 = arith.constant 0 : i32
    return %arg0, %c0_i32 : i32, i32
  }
  func.func @transform_3(%arg0: i32) -> (i32, i32) {
    %c0_i32 = arith.constant 0 : i32
    %c0_i32_0 = arith.constant 0 : i32
    %c0_i32_1 = arith.constant 0 : i32
    return %c0_i32, %c0_i32_0 : i32, i32
  }
  func.func @transform_4(%arg0: i32) -> (i32, i32) {
    %c0_i32 = arith.constant 0 : i32
    %c0_i32_0 = arith.constant 0 : i32
    return %arg0, %c0_i32 : i32, i32
  }
  func.func @transform_5(%arg0: i32) -> (i32, i32) {
    %c0_i32 = arith.constant 0 : i32
    %c0_i32_0 = arith.constant 0 : i32
    return %arg0, %c0_i32 : i32, i32
  }
}

module attributes {stable_mosaic.version = 11 : i64} {
  func.func @_repr_net_kernel(%arg0: i32, %arg1: memref<8x256xf32, #tpu.memory_space<vmem>>, %arg2: memref<256x16xf32, #tpu.memory_space<vmem>>, %arg3: memref<8x64xf32, #tpu.memory_space<vmem>>, %arg4: memref<64x16xf32, #tpu.memory_space<vmem>>, %arg5: memref<8x16xf32, #tpu.memory_space<vmem>>, %arg6: memref<8x16xf32, #tpu.memory_space<vmem>>) attributes {dimension_semantics = [#tpu.dimension_semantics<parallel>], iteration_bounds = array<i64: 1>, scalar_prefetch = 0 : i64, scratch_operands = 0 : i64, tpu.core_type = #tpu.core_type<tc>, window_params = [{transform_indices = @transform_0, window_bounds = array<i64: 8, 256>}, {pipeline_mode = #tpu.pipeline_mode<synchronous>, transform_indices = @transform_1, window_bounds = array<i64: 256, 16>}, {transform_indices = @transform_2, window_bounds = array<i64: 8, 64>}, {pipeline_mode = #tpu.pipeline_mode<synchronous>, transform_indices = @transform_3, window_bounds = array<i64: 64, 16>}, {transform_indices = @transform_4, window_bounds = array<i64: 8, 16>}, {transform_indices = @transform_5, window_bounds = array<i64: 8, 16>}]} {
    %c0 = arith.constant 0 : index
    %c0_0 = arith.constant 0 : index
    %0 = vector.load %arg1[%c0, %c0_0] : memref<8x256xf32, #tpu.memory_space<vmem>>, vector<8x256xf32>
    %c0_1 = arith.constant 0 : index
    %c0_2 = arith.constant 0 : index
    %1 = vector.load %arg2[%c0_1, %c0_2] : memref<256x16xf32, #tpu.memory_space<vmem>>, vector<256x16xf32>
    %cst = arith.constant dense<0.000000e+00> : vector<8x16xf32>
    %2 = tpu.matmul %0, %1, %cst {dimension_numbers = #tpu.dot_dimension_numbers<[1], [0], [0], [1], [0, 0, 1, 1], [], []>} : vector<8x256xf32>, vector<256x16xf32>, vector<8x16xf32> -> vector<8x16xf32>
    %c0_3 = arith.constant 0 : index
    %c0_4 = arith.constant 0 : index
    %3 = vector.load %arg6[%c0_3, %c0_4] : memref<8x16xf32, #tpu.memory_space<vmem>>, vector<8x16xf32>
    tpu.vector_store %arg6[%c0_3, %c0_4], %2 {strides = array<i32>} : memref<8x16xf32, #tpu.memory_space<vmem>>, vector<8x16xf32>,
    %c0_5 = arith.constant 0 : index
    %c0_6 = arith.constant 0 : index
    %4 = vector.load %arg3[%c0_5, %c0_6] : memref<8x64xf32, #tpu.memory_space<vmem>>, vector<8x64xf32>
    %c0_7 = arith.constant 0 : index
    %c0_8 = arith.constant 0 : index
    %5 = vector.load %arg4[%c0_7, %c0_8] : memref<64x16xf32, #tpu.memory_space<vmem>>, vector<64x16xf32>
    %cst_9 = arith.constant dense<0.000000e+00> : vector<8x16xf32>
    %6 = tpu.matmul %4, %5, %cst_9 {dimension_numbers = #tpu.dot_dimension_numbers<[1], [0], [0], [1], [0, 0, 1, 1], [], []>} : vector<8x64xf32>, vector<64x16xf32>, vector<8x16xf32> -> vector<8x16xf32>
    %c0_10 = arith.constant 0 : index
    %c0_11 = arith.constant 0 : index
    %7 = vector.load %arg6[%c0_10, %c0_11] : memref<8x16xf32, #tpu.memory_space<vmem>>, vector<8x16xf32>
    %8 = arith.addf %7, %6 : vector<8x16xf32>
    %c0_12 = arith.constant 0 : index
    %c0_13 = arith.constant 0 : index
    %9 = vector.load %arg6[%c0_12, %c0_13] : memref<8x16xf32, #tpu.memory_space<vmem>>, vector<8x16xf32>
    tpu.vector_store %arg6[%c0_12, %c0_13], %8 {strides = array<i32>} : memref<8x16xf32, #tpu.memory_space<vmem>>, vector<8x16xf32>,
    %c0_14 = arith.constant 0 : index
    %c0_15 = arith.constant 0 : index
    %10 = vector.load %arg5[%c0_14, %c0_15] : memref<8x16xf32, #tpu.memory_space<vmem>>, vector<8x16xf32>
    %c0_16 = arith.constant 0 : index
    %c0_17 = arith.constant 0 : index
    %11 = vector.load %arg6[%c0_16, %c0_17] : memref<8x16xf32, #tpu.memory_space<vmem>>, vector<8x16xf32>
    %12 = arith.addf %11, %10 : vector<8x16xf32>
    %c0_18 = arith.constant 0 : index
    %c0_19 = arith.constant 0 : index
    %13 = vector.load %arg6[%c0_18, %c0_19] : memref<8x16xf32, #tpu.memory_space<vmem>>, vector<8x16xf32>
    tpu.vector_store %arg6[%c0_18, %c0_19], %12 {strides = array<i32>} : memref<8x16xf32, #tpu.memory_space<vmem>>, vector<8x16xf32>,
    return
  }
  func.func @transform_0(%arg0: i32) -> (i32, i32) {
    %c0_i32 = arith.constant 0 : i32
    %c0_i32_0 = arith.constant 0 : i32
    return %arg0, %c0_i32 : i32, i32
  }
  func.func @transform_1(%arg0: i32) -> (i32, i32) {
    %c0_i32 = arith.constant 0 : i32
    %c0_i32_0 = arith.constant 0 : i32
    %c0_i32_1 = arith.constant 0 : i32
    return %c0_i32, %c0_i32_0 : i32, i32
  }
  func.func @transform_2(%arg0: i32) -> (i32, i32) {
    %c0_i32 = arith.constant 0 : i32
    %c0_i32_0 = arith.constant 0 : i32
    return %arg0, %c0_i32 : i32, i32
  }
  func.func @transform_3(%arg0: i32) -> (i32, i32) {
    %c0_i32 = arith.constant 0 : i32
    %c0_i32_0 = arith.constant 0 : i32
    %c0_i32_1 = arith.constant 0 : i32
    return %c0_i32, %c0_i32_0 : i32, i32
  }
  func.func @transform_4(%arg0: i32) -> (i32, i32) {
    %c0_i32 = arith.constant 0 : i32
    %c0_i32_0 = arith.constant 0 : i32
    return %arg0, %c0_i32 : i32, i32
  }
  func.func @transform_5(%arg0: i32) -> (i32, i32) {
    %c0_i32 = arith.constant 0 : i32
    %c0_i32_0 = arith.constant 0 : i32
    return %arg0, %c0_i32 : i32, i32
  }
}

</mosaic_0001>

<llo_original>
// kernel: tpu_custom_call.1
$region0: #{tpu_custom_call.1}
  #allocation0 [shape = 'u32[]', space=smem, size = 0x4, offset = 0x4, fixed_abs, tag = 'smem constant byte address 0x4 - core index']
  #allocation1 [shape = 'u32[144,128]{1,0:T(1,128)}', space=vmem, size = 0x12000, scoped, tag = 'internal scratch']
  %s0 = inlined_call_operand.vmem [shape: f32[8,256], index: 0, kind: input, shape index: {}]
  %s1 = inlined_call_operand.vmem [shape: f32[256,16], index: 1, kind: input, shape index: {}]
  %s2 = inlined_call_operand.vmem [shape: f32[8,64], index: 2, kind: input, shape index: {}]
  %s3 = inlined_call_operand.vmem [shape: f32[64,16], index: 3, kind: input, shape index: {}]
  %s4 = inlined_call_operand.vmem [shape: f32[8,16], index: 4, kind: input, shape index: {}]
  %s5 = inlined_call_operand.hbm [shape: f32[8,16], index: 5, kind: output, shape index: {}]
  %s6 = sld [smem:[#allocation0]]
  $region30: #{tpu_custom_call.1} parent=0
    _
  %s8 = ssub.s32 1, %s6
  %s9 = scalar_select 0, %s8, %s6
  $region1: #{tpu_custom_call.1} parent=0
    #allocation2 [shape = 'u8[4096]{0}', space=vmem, size = 0x1000, scoped, tag = 'output window, operand 0, single buffered']
    #allocation3 [shape = 's32[1]{0}', space=sflag, size = 0x4, scoped, tag = 'scoped memory for tpu_custom_call.1']
    %10 = vsyncpa [#allocation3], 0
    // Predicated region
    $region2: #{tpu_custom_call.1} parent=1 // pred_check
      _
    $region3: #{tpu_custom_call.1} parent=1 // pred_check_branch
      %12 = sbr.rel (0) target = $region5
    $region4: #{tpu_custom_call.1} parent=1 // pred_region
      _
    $region5: #{tpu_custom_call.1} parent=1 // pred_fallthru
      _
    // Predicated region
    $region6: #{tpu_custom_call.1} parent=1 // pred_check
      _
    $region7: #{tpu_custom_call.1} parent=1 // pred_check_branch
      %14 = sbr.rel (0) target = $region9
    $region8: #{tpu_custom_call.1} parent=1 // pred_region
      _
    $region9: #{tpu_custom_call.1} parent=1 // pred_fallthru
      _
    // Predicated region
    $region10: #{tpu_custom_call.1} parent=1 // pred_check
      _
    $region11: #{tpu_custom_call.1} parent=1 // pred_check_branch
      %16 = sbr.rel (0) target = $region13
    $region12: #{tpu_custom_call.1} parent=1 // pred_region
      _
    $region13: #{tpu_custom_call.1} parent=1 // pred_fallthru
      _
    // Predicated region
    $region14: #{tpu_custom_call.1} parent=1 // pred_check
      _
    $region15: #{tpu_custom_call.1} parent=1 // pred_check_branch
      %18 = sbr.rel (0) target = $region17
    $region16: #{tpu_custom_call.1} parent=1 // pred_region
      _
    $region17: #{tpu_custom_call.1} parent=1 // pred_fallthru
      _
    // Predicated region
    $region18: #{tpu_custom_call.1} parent=1 // pred_check
      _
    $region19: #{tpu_custom_call.1} parent=1 // pred_check_branch
      %20 = sbr.rel (0) target = $region21
    $region20: #{tpu_custom_call.1} parent=1 // pred_region
      _
    $region21: #{tpu_custom_call.1} parent=1 // pred_fallthru
      _
    %v21 = vld [vmem:[%s0] sm:$0xff]
    %v22 = vld [vmem:[%s0 + $0x8] sm:$0xff]
    %v23 = vld [vmem:[%s1] sm:$0xff]
    %v24 = vld [vmem:[%s1 + $0x8] sm:$0xff]
    %v25 = vld [vmem:[%s1 + $0x10] sm:$0xff]
    %v26 = vld [vmem:[%s1 + $0x18] sm:$0xff]
    %v27 = vld [vmem:[%s1 + $0x20] sm:$0xff]
    %v28 = vld [vmem:[%s1 + $0x28] sm:$0xff]
    %v29 = vld [vmem:[%s1 + $0x30] sm:$0xff]
    %v30 = vld [vmem:[%s1 + $0x38] sm:$0xff]
    %v31 = vld [vmem:[%s1 + $0x40] sm:$0xff]
    %v32 = vld [vmem:[%s1 + $0x48] sm:$0xff]
    %v33 = vld [vmem:[%s1 + $0x50] sm:$0xff]
    %v34 = vld [vmem:[%s1 + $0x58] sm:$0xff]
    %v35 = vld [vmem:[%s1 + $0x60] sm:$0xff]
    %v36 = vld [vmem:[%s1 + $0x68] sm:$0xff]
    %v37 = vld [vmem:[%s1 + $0x70] sm:$0xff]
    %v38 = vld [vmem:[%s1 + $0x78] sm:$0xff]
    %v39 = vld [vmem:[%s1 + $0x80] sm:$0xff]
    %v40 = vld [vmem:[%s1 + $0x88] sm:$0xff]
    %v41 = vld [vmem:[%s1 + $0x90] sm:$0xff]
    %v42 = vld [vmem:[%s1 + $0x98] sm:$0xff]
    %v43 = vld [vmem:[%s1 + $0xa0] sm:$0xff]
    %v44 = vld [vmem:[%s1 + $0xa8] sm:$0xff]
    %v45 = vld [vmem:[%s1 + $0xb0] sm:$0xff]
    %v46 = vld [vmem:[%s1 + $0xb8] sm:$0xff]
    %v47 = vld [vmem:[%s1 + $0xc0] sm:$0xff]
    %v48 = vld [vmem:[%s1 + $0xc8] sm:$0xff]
    %v49 = vld [vmem:[%s1 + $0xd0] sm:$0xff]
    %v50 = vld [vmem:[%s1 + $0xd8] sm:$0xff]
    %v51 = vld [vmem:[%s1 + $0xe0] sm:$0xff]
    %v52 = vld [vmem:[%s1 + $0xe8] sm:$0xff]
    %v53 = vld [vmem:[%s1 + $0xf0] sm:$0xff]
    %v54 = vld [vmem:[%s1 + $0xf8] sm:$0xff]
    %55 = vmatprep.subr.mxu0 0.0
    %56 = vmatpush1.msra.mxu0 %v38
    %57 = vmatprep.subr.mxu0 0.0
    %58 = vmatpush1.msra.mxu0 %v37
    %59 = vmatprep.subr.mxu0 0.0
    %60 = vmatpush1.msra.mxu0 %v36
    %61 = vmatprep.subr.mxu0 0.0
    %62 = vmatpush1.msra.mxu0 %v35
    %63 = vmatprep.subr.mxu0 0.0
    %64 = vmatpush1.msra.mxu0 %v34
    %65 = vmatprep.subr.mxu0 0.0
    %66 = vmatpush1.msra.mxu0 %v33
    %67 = vmatprep.subr.mxu0 0.0
    %68 = vmatpush1.msra.mxu0 %v32
    %69 = vmatprep.subr.mxu0 0.0
    %70 = vmatpush1.msra.mxu0 %v31
    %71 = vmatprep.subr.mxu0 0.0
    %72 = vmatpush1.msra.mxu0 %v30
    %73 = vmatprep.subr.mxu0 0.0
    %74 = vmatpush1.msra.mxu0 %v29
    %75 = vmatprep.subr.mxu0 0.0
    %76 = vmatpush1.msra.mxu0 %v28
    %77 = vmatprep.subr.mxu0 0.0
    %78 = vmatpush1.msra.mxu0 %v27
    %79 = vmatprep.subr.mxu0 0.0
    %80 = vmatpush1.msra.mxu0 %v26
    %81 = vmatprep.subr.mxu0 0.0
    %82 = vmatpush1.msra.mxu0 %v25
    %83 = vmatprep.subr.mxu0 0.0
    %84 = vmatpush1.msra.mxu0 %v24
    %85 = vmatprep.subr.mxu0 0.0
    %86 = vmatpush1.msra.mxu0 %v23
    %87 = vmatprep.subr.mxu0 0.0
    %88 = vmatpush2.msra.mxu0 %v54
    %89 = vmatprep.subr.mxu0 0.0
    %90 = vmatpush2.msra.mxu0 %v53
    %91 = vmatprep.subr.mxu0 0.0
    %92 = vmatpush2.msra.mxu0 %v52
    %93 = vmatprep.subr.mxu0 0.0
    %94 = vmatpush2.msra.mxu0 %v51
    %95 = vmatprep.subr.mxu0 0.0
    %96 = vmatpush2.msra.mxu0 %v50
    %97 = vmatprep.subr.mxu0 0.0
    %98 = vmatpush2.msra.mxu0 %v49
    %99 = vmatprep.subr.mxu0 0.0
    %100 = vmatpush2.msra.mxu0 %v48
    %101 = vmatprep.subr.mxu0 0.0
    %102 = vmatpush2.msra.mxu0 %v47
    %103 = vmatprep.subr.mxu0 0.0
    %104 = vmatpush2.msra.mxu0 %v46
    %105 = vmatprep.subr.mxu0 0.0
    %106 = vmatpush2.msra.mxu0 %v45
    %107 = vmatprep.subr.mxu0 0.0
    %108 = vmatpush2.msra.mxu0 %v44
    %109 = vmatprep.subr.mxu0 0.0
    %110 = vmatpush2.msra.mxu0 %v43
    %111 = vmatprep.subr.mxu0 0.0
    %112 = vmatpush2.msra.mxu0 %v42
    %113 = vmatprep.subr.mxu0 0.0
    %114 = vmatpush2.msra.mxu0 %v41
    %115 = vmatprep.subr.mxu0 0.0
    %116 = vmatpush2.msra.mxu0 %v40
    %117 = vmatprep.subr.mxu0 0.0
    %118 = vmatpush2.msra.mxu0 %v39
    %119 = vmatprep.mubr.f32.mxu0 %v22
    %120 = vmatmul.mubr.f32.gmra.mxu0 %v21
    %v121 = vpop.f32.mrf.mxu0
    %v122 = vadd.f32 0.0, %v121
    %v123 = vpop.f32.mrf.mxu0
    %124 = vdwg.mxu0
    %vm125 = vcmask 130048
    %126 = vst.msk [vmem:[#allocation2] sm:$0xff] %vm125, %v122
    %v127 = vld [vmem:[%s2] sm:$0xff]
    %v128 = vld [vmem:[%s3] sm:$0xff]
    %v129 = vld [vmem:[%s3 + $0x8] sm:$0xff]
    %v130 = vld [vmem:[%s3 + $0x10] sm:$0xff]
    %v131 = vld [vmem:[%s3 + $0x18] sm:$0xff]
    %v132 = vld [vmem:[%s3 + $0x20] sm:$0xff]
    %v133 = vld [vmem:[%s3 + $0x28] sm:$0xff]
    %v134 = vld [vmem:[%s3 + $0x30] sm:$0xff]
    %v135 = vld [vmem:[%s3 + $0x38] sm:$0xff]
    %vm136 = vcmask 523264
    %v138 = vsel %vm136, %v127, 0
    %140 = vmatprep.subr.mxu0 0.0
    %141 = vmatpush1.msra.mxu0 0.0
    %142 = vmatprep.subr.mxu0 0.0
    %143 = vmatpush1.msra.mxu0 0.0
    %144 = vmatprep.subr.mxu0 0.0
    %145 = vmatpush1.msra.mxu0 0.0
    %146 = vmatprep.subr.mxu0 0.0
    %147 = vmatpush1.msra.mxu0 0.0
    %148 = vmatprep.subr.mxu0 0.0
    %149 = vmatpush1.msra.mxu0 0.0
    %150 = vmatprep.subr.mxu0 0.0
    %151 = vmatpush1.msra.mxu0 0.0
    %152 = vmatprep.subr.mxu0 0.0
    %153 = vmatpush1.msra.mxu0 0.0
    %154 = vmatprep.subr.mxu0 0.0
    %155 = vmatpush1.msra.mxu0 0.0
    %156 = vmatprep.subr.mxu0 0.0
    %157 = vmatpush1.msra.mxu0 %v135
    %158 = vmatprep.subr.mxu0 0.0
    %159 = vmatpush1.msra.mxu0 %v134
    %160 = vmatprep.subr.mxu0 0.0
    %161 = vmatpush1.msra.mxu0 %v133
    %162 = vmatprep.subr.mxu0 0.0
    %163 = vmatpush1.msra.mxu0 %v132
    %164 = vmatprep.subr.mxu0 0.0
    %165 = vmatpush1.msra.mxu0 %v131
    %166 = vmatprep.subr.mxu0 0.0
    %167 = vmatpush1.msra.mxu0 %v130
    %168 = vmatprep.subr.mxu0 0.0
    %169 = vmatpush1.msra.mxu0 %v129
    %170 = vmatprep.subr.mxu0 0.0
    %171 = vmatpush1.msra.mxu0 %v128
    %172 = vmatprep.subr.mxu0 0.0
    %173 = vmatpush2.msra.mxu0 0.0
    %174 = vmatprep.subr.mxu0 0.0
    %175 = vmatpush2.msra.mxu0 0.0
    %176 = vmatprep.subr.mxu0 0.0
    %177 = vmatpush2.msra.mxu0 0.0
    %178 = vmatprep.subr.mxu0 0.0
    %179 = vmatpush2.msra.mxu0 0.0
    %180 = vmatprep.subr.mxu0 0.0
    %181 = vmatpush2.msra.mxu0 0.0
    %182 = vmatprep.subr.mxu0 0.0
    %183 = vmatpush2.msra.mxu0 0.0
    %184 = vmatprep.subr.mxu0 0.0
    %185 = vmatpush2.msra.mxu0 0.0
    %186 = vmatprep.subr.mxu0 0.0
    %187 = vmatpush2.msra.mxu0 0.0
    %188 = vmatprep.subr.mxu0 0.0
    %189 = vmatpush2.msra.mxu0 0.0
    %190 = vmatprep.subr.mxu0 0.0
    %191 = vmatpush2.msra.mxu0 0.0
    %192 = vmatprep.subr.mxu0 0.0
    %193 = vmatpush2.msra.mxu0 0.0
    %194 = vmatprep.subr.mxu0 0.0
    %195 = vmatpush2.msra.mxu0 0.0
    %196 = vmatprep.subr.mxu0 0.0
    %197 = vmatpush2.msra.mxu0 0.0
    %198 = vmatprep.subr.mxu0 0.0
    %199 = vmatpush2.msra.mxu0 0.0
    %200 = vmatprep.subr.mxu0 0.0
    %201 = vmatpush2.msra.mxu0 0.0
    %202 = vmatprep.subr.mxu0 0.0
    %203 = vmatpush2.msra.mxu0 0.0
    %204 = vmatprep.mubr.f32.mxu0 0.0
    %205 = vmatmul.mubr.f32.gmra.mxu0 %v138
    %v206 = vpop.f32.mrf.mxu0
    %v207 = vadd.f32 0.0, %v206
    %v208 = vpop.f32.mrf.mxu0
    %209 = vdwg.mxu0
    %v210 = vld [vmem:[#allocation2] sm:$0xff]
    %v211 = vadd.f32 %v210, %v207
    %212 = vst.msk [vmem:[#allocation2] sm:$0xff] %vm125, %v211
    %v213 = vld [vmem:[%s4] sm:$0xff]
    %v214 = vld [vmem:[#allocation2] sm:$0xff]
    %v215 = vadd.f32 %v214, %v213
    %216 = vst.msk [vmem:[#allocation2] sm:$0xff] %vm125, %v215
    // Predicated region
    $region22: #{tpu_custom_call.1} parent=1 // pred_check
      _
    $region23: #{tpu_custom_call.1} parent=1 // pred_check_branch
      %218 = sbr.rel (0) target = $region25
    $region24: #{tpu_custom_call.1} parent=1 // pred_region
      %s220 = ssub.s32 128, 128
      %221 = vsyncadd [#allocation3], %s220
      %s223 = sshll.u32 [#allocation2], 4
      %s224 = int_to_ptr.vmem [resolvable:$true] %s223
      %226 = dma.vmem_to_hbm [thread:$0]  %s224, 128, %s5, [#allocation3]
    $region25: #{tpu_custom_call.1} parent=1 // pred_fallthru
      _
    // Predicated region
    $region26: #{tpu_custom_call.1} parent=1 // pred_check
      _
    $region27: #{tpu_custom_call.1} parent=1 // pred_check_branch
      %228 = sbr.rel (0) target = $region29
    $region28: #{tpu_custom_call.1} parent=1 // pred_region
      %229 = dma.done [#allocation3], 128
    $region29: #{tpu_custom_call.1} parent=1 // pred_fallthru
      _
    %230 = vsyncpa [#allocation3], 1

// kernel: tpu_custom_call.1
$region0: #{tpu_custom_call.1}
  #allocation0 [shape = 'u32[]', space=smem, size = 0x4, offset = 0x4, fixed_abs, tag = 'smem constant byte address 0x4 - core index']
  #allocation1 [shape = 'u32[144,128]{1,0:T(1,128)}', space=vmem, size = 0x12000, scoped, tag = 'internal scratch']
  %s0 = inlined_call_operand.vmem [shape: f32[8,256], index: 0, kind: input, shape index: {}]
  %s1 = inlined_call_operand.vmem [shape: f32[256,16], index: 1, kind: input, shape index: {}]
  %s2 = inlined_call_operand.vmem [shape: f32[8,64], index: 2, kind: input, shape index: {}]
  %s3 = inlined_call_operand.vmem [shape: f32[64,16], index: 3, kind: input, shape index: {}]
  %s4 = inlined_call_operand.vmem [shape: f32[8,16], index: 4, kind: input, shape index: {}]
  %s5 = inlined_call_operand.hbm [shape: f32[8,16], index: 5, kind: output, shape index: {}]
  %s6 = sld [smem:[#allocation0]]
  $region30: #{tpu_custom_call.1} parent=0
    _
  %s8 = ssub.s32 1, %s6
  %s9 = scalar_select 0, %s8, %s6
  $region1: #{tpu_custom_call.1} parent=0
    #allocation2 [shape = 'u8[4096]{0}', space=vmem, size = 0x1000, scoped, tag = 'output window, operand 0, single buffered']
    #allocation3 [shape = 's32[1]{0}', space=sflag, size = 0x4, scoped, tag = 'scoped memory for tpu_custom_call.1']
    %10 = vsyncpa [#allocation3], 0
    // Predicated region
    $region2: #{tpu_custom_call.1} parent=1 // pred_check
      _
    $region3: #{tpu_custom_call.1} parent=1 // pred_check_branch
      %12 = sbr.rel (0) target = $region5
    $region4: #{tpu_custom_call.1} parent=1 // pred_region
      _
    $region5: #{tpu_custom_call.1} parent=1 // pred_fallthru
      _
    // Predicated region
    $region6: #{tpu_custom_call.1} parent=1 // pred_check
      _
    $region7: #{tpu_custom_call.1} parent=1 // pred_check_branch
      %14 = sbr.rel (0) target = $region9
    $region8: #{tpu_custom_call.1} parent=1 // pred_region
      _
    $region9: #{tpu_custom_call.1} parent=1 // pred_fallthru
      _
    // Predicated region
    $region10: #{tpu_custom_call.1} parent=1 // pred_check
      _
    $region11: #{tpu_custom_call.1} parent=1 // pred_check_branch
      %16 = sbr.rel (0) target = $region13
    $region12: #{tpu_custom_call.1} parent=1 // pred_region
      _
    $region13: #{tpu_custom_call.1} parent=1 // pred_fallthru
      _
    // Predicated region
    $region14: #{tpu_custom_call.1} parent=1 // pred_check
      _
    $region15: #{tpu_custom_call.1} parent=1 // pred_check_branch
      %18 = sbr.rel (0) target = $region17
    $region16: #{tpu_custom_call.1} parent=1 // pred_region
      _
    $region17: #{tpu_custom_call.1} parent=1 // pred_fallthru
      _
    // Predicated region
    $region18: #{tpu_custom_call.1} parent=1 // pred_check
      _
    $region19: #{tpu_custom_call.1} parent=1 // pred_check_branch
      %20 = sbr.rel (0) target = $region21
    $region20: #{tpu_custom_call.1} parent=1 // pred_region
      _
    $region21: #{tpu_custom_call.1} parent=1 // pred_fallthru
      _
    %v21 = vld [vmem:[%s0] sm:$0xff]
    %v22 = vld [vmem:[%s0 + $0x8] sm:$0xff]
    %v23 = vld [vmem:[%s1] sm:$0xff]
    %v24 = vld [vmem:[%s1 + $0x8] sm:$0xff]
    %v25 = vld [vmem:[%s1 + $0x10] sm:$0xff]
    %v26 = vld [vmem:[%s1 + $0x18] sm:$0xff]
    %v27 = vld [vmem:[%s1 + $0x20] sm:$0xff]
    %v28 = vld [vmem:[%s1 + $0x28] sm:$0xff]
    %v29 = vld [vmem:[%s1 + $0x30] sm:$0xff]
    %v30 = vld [vmem:[%s1 + $0x38] sm:$0xff]
    %v31 = vld [vmem:[%s1 + $0x40] sm:$0xff]
    %v32 = vld [vmem:[%s1 + $0x48] sm:$0xff]
    %v33 = vld [vmem:[%s1 + $0x50] sm:$0xff]
    %v34 = vld [vmem:[%s1 + $0x58] sm:$0xff]
    %v35 = vld [vmem:[%s1 + $0x60] sm:$0xff]
    %v36 = vld [vmem:[%s1 + $0x68] sm:$0xff]
    %v37 = vld [vmem:[%s1 + $0x70] sm:$0xff]
    %v38 = vld [vmem:[%s1 + $0x78] sm:$0xff]
    %v39 = vld [vmem:[%s1 + $0x80] sm:$0xff]
    %v40 = vld [vmem:[%s1 + $0x88] sm:$0xff]
    %v41 = vld [vmem:[%s1 + $0x90] sm:$0xff]
    %v42 = vld [vmem:[%s1 + $0x98] sm:$0xff]
    %v43 = vld [vmem:[%s1 + $0xa0] sm:$0xff]
    %v44 = vld [vmem:[%s1 + $0xa8] sm:$0xff]
    %v45 = vld [vmem:[%s1 + $0xb0] sm:$0xff]
    %v46 = vld [vmem:[%s1 + $0xb8] sm:$0xff]
    %v47 = vld [vmem:[%s1 + $0xc0] sm:$0xff]
    %v48 = vld [vmem:[%s1 + $0xc8] sm:$0xff]
    %v49 = vld [vmem:[%s1 + $0xd0] sm:$0xff]
    %v50 = vld [vmem:[%s1 + $0xd8] sm:$0xff]
    %v51 = vld [vmem:[%s1 + $0xe0] sm:$0xff]
    %v52 = vld [vmem:[%s1 + $0xe8] sm:$0xff]
    %v53 = vld [vmem:[%s1 + $0xf0] sm:$0xff]
    %v54 = vld [vmem:[%s1 + $0xf8] sm:$0xff]
    %55 = vmatprep.subr.mxu0 0.0
    %56 = vmatpush1.msra.mxu0 %v38
    %57 = vmatprep.subr.mxu0 0.0
    %58 = vmatpush1.msra.mxu0 %v37
    %59 = vmatprep.subr.mxu0 0.0
    %60 = vmatpush1.msra.mxu0 %v36
    %61 = vmatprep.subr.mxu0 0.0
    %62 = vmatpush1.msra.mxu0 %v35
    %63 = vmatprep.subr.mxu0 0.0
    %64 = vmatpush1.msra.mxu0 %v34
    %65 = vmatprep.subr.mxu0 0.0
    %66 = vmatpush1.msra.mxu0 %v33
    %67 = vmatprep.subr.mxu0 0.0
    %68 = vmatpush1.msra.mxu0 %v32
    %69 = vmatprep.subr.mxu0 0.0
    %70 = vmatpush1.msra.mxu0 %v31
    %71 = vmatprep.subr.mxu0 0.0
    %72 = vmatpush1.msra.mxu0 %v30
    %73 = vmatprep.subr.mxu0 0.0
    %74 = vmatpush1.msra.mxu0 %v29
    %75 = vmatprep.subr.mxu0 0.0
    %76 = vmatpush1.msra.mxu0 %v28
    %77 = vmatprep.subr.mxu0 0.0
    %78 = vmatpush1.msra.mxu0 %v27
    %79 = vmatprep.subr.mxu0 0.0
    %80 = vmatpush1.msra.mxu0 %v26
    %81 = vmatprep.subr.mxu0 0.0
    %82 = vmatpush1.msra.mxu0 %v25
    %83 = vmatprep.subr.mxu0 0.0
    %84 = vmatpush1.msra.mxu0 %v24
    %85 = vmatprep.subr.mxu0 0.0
    %86 = vmatpush1.msra.mxu0 %v23
    %87 = vmatprep.subr.mxu0 0.0
    %88 = vmatpush2.msra.mxu0 %v54
    %89 = vmatprep.subr.mxu0 0.0
    %90 = vmatpush2.msra.mxu0 %v53
    %91 = vmatprep.subr.mxu0 0.0
    %92 = vmatpush2.msra.mxu0 %v52
    %93 = vmatprep.subr.mxu0 0.0
    %94 = vmatpush2.msra.mxu0 %v51
    %95 = vmatprep.subr.mxu0 0.0
    %96 = vmatpush2.msra.mxu0 %v50
    %97 = vmatprep.subr.mxu0 0.0
    %98 = vmatpush2.msra.mxu0 %v49
    %99 = vmatprep.subr.mxu0 0.0
    %100 = vmatpush2.msra.mxu0 %v48
    %101 = vmatprep.subr.mxu0 0.0
    %102 = vmatpush2.msra.mxu0 %v47
    %103 = vmatprep.subr.mxu0 0.0
    %104 = vmatpush2.msra.mxu0 %v46
    %105 = vmatprep.subr.mxu0 0.0
    %106 = vmatpush2.msra.mxu0 %v45
    %107 = vmatprep.subr.mxu0 0.0
    %108 = vmatpush2.msra.mxu0 %v44
    %109 = vmatprep.subr.mxu0 0.0
    %110 = vmatpush2.msra.mxu0 %v43
    %111 = vmatprep.subr.mxu0 0.0
    %112 = vmatpush2.msra.mxu0 %v42
    %113 = vmatprep.subr.mxu0 0.0
    %114 = vmatpush2.msra.mxu0 %v41
    %115 = vmatprep.subr.mxu0 0.0
    %116 = vmatpush2.msra.mxu0 %v40
    %117 = vmatprep.subr.mxu0 0.0
    %118 = vmatpush2.msra.mxu0 %v39
    %119 = vmatprep.mubr.f32.mxu0 %v22
    %120 = vmatmul.mubr.f32.gmra.mxu0 %v21
    %v121 = vpop.f32.mrf.mxu0
    %v122 = vadd.f32 0.0, %v121
    %v123 = vpop.f32.mrf.mxu0
    %124 = vdwg.mxu0
    %vm125 = vcmask 130048
    %126 = vst.msk [vmem:[#allocation2] sm:$0xff] %vm125, %v122
    %v127 = vld [vmem:[%s2] sm:$0xff]
    %v128 = vld [vmem:[%s3] sm:$0xff]
    %v129 = vld [vmem:[%s3 + $0x8] sm:$0xff]
    %v130 = vld [vmem:[%s3 + $0x10] sm:$0xff]
    %v131 = vld [vmem:[%s3 + $0x18] sm:$0xff]
    %v132 = vld [vmem:[%s3 + $0x20] sm:$0xff]
    %v133 = vld [vmem:[%s3 + $0x28] sm:$0xff]
    %v134 = vld [vmem:[%s3 + $0x30] sm:$0xff]
    %v135 = vld [vmem:[%s3 + $0x38] sm:$0xff]
    %vm136 = vcmask 523264
    %v138 = vsel %vm136, %v127, 0
    %140 = vmatprep.subr.mxu0 0.0
    %141 = vmatpush1.msra.mxu0 0.0
    %142 = vmatprep.subr.mxu0 0.0
    %143 = vmatpush1.msra.mxu0 0.0
    %144 = vmatprep.subr.mxu0 0.0
    %145 = vmatpush1.msra.mxu0 0.0
    %146 = vmatprep.subr.mxu0 0.0
    %147 = vmatpush1.msra.mxu0 0.0
    %148 = vmatprep.subr.mxu0 0.0
    %149 = vmatpush1.msra.mxu0 0.0
    %150 = vmatprep.subr.mxu0 0.0
    %151 = vmatpush1.msra.mxu0 0.0
    %152 = vmatprep.subr.mxu0 0.0
    %153 = vmatpush1.msra.mxu0 0.0
    %154 = vmatprep.subr.mxu0 0.0
    %155 = vmatpush1.msra.mxu0 0.0
    %156 = vmatprep.subr.mxu0 0.0
    %157 = vmatpush1.msra.mxu0 %v135
    %158 = vmatprep.subr.mxu0 0.0
    %159 = vmatpush1.msra.mxu0 %v134
    %160 = vmatprep.subr.mxu0 0.0
    %161 = vmatpush1.msra.mxu0 %v133
    %162 = vmatprep.subr.mxu0 0.0
    %163 = vmatpush1.msra.mxu0 %v132
    %164 = vmatprep.subr.mxu0 0.0
    %165 = vmatpush1.msra.mxu0 %v131
    %166 = vmatprep.subr.mxu0 0.0
    %167 = vmatpush1.msra.mxu0 %v130
    %168 = vmatprep.subr.mxu0 0.0
    %169 = vmatpush1.msra.mxu0 %v129
    %170 = vmatprep.subr.mxu0 0.0
    %171 = vmatpush1.msra.mxu0 %v128
    %172 = vmatprep.subr.mxu0 0.0
    %173 = vmatpush2.msra.mxu0 0.0
    %174 = vmatprep.subr.mxu0 0.0
    %175 = vmatpush2.msra.mxu0 0.0
    %176 = vmatprep.subr.mxu0 0.0
    %177 = vmatpush2.msra.mxu0 0.0
    %178 = vmatprep.subr.mxu0 0.0
    %179 = vmatpush2.msra.mxu0 0.0
    %180 = vmatprep.subr.mxu0 0.0
    %181 = vmatpush2.msra.mxu0 0.0
    %182 = vmatprep.subr.mxu0 0.0
    %183 = vmatpush2.msra.mxu0 0.0
    %184 = vmatprep.subr.mxu0 0.0
    %185 = vmatpush2.msra.mxu0 0.0
    %186 = vmatprep.subr.mxu0 0.0
    %187 = vmatpush2.msra.mxu0 0.0
    %188 = vmatprep.subr.mxu0 0.0
    %189 = vmatpush2.msra.mxu0 0.0
    %190 = vmatprep.subr.mxu0 0.0
    %191 = vmatpush2.msra.mxu0 0.0
    %192 = vmatprep.subr.mxu0 0.0
    %193 = vmatpush2.msra.mxu0 0.0
    %194 = vmatprep.subr.mxu0 0.0
    %195 = vmatpush2.msra.mxu0 0.0
    %196 = vmatprep.subr.mxu0 0.0
    %197 = vmatpush2.msra.mxu0 0.0
    %198 = vmatprep.subr.mxu0 0.0
    %199 = vmatpush2.msra.mxu0 0.0
    %200 = vmatprep.subr.mxu0 0.0
    %201 = vmatpush2.msra.mxu0 0.0
    %202 = vmatprep.subr.mxu0 0.0
    %203 = vmatpush2.msra.mxu0 0.0
    %204 = vmatprep.mubr.f32.mxu0 0.0
    %205 = vmatmul.mubr.f32.gmra.mxu0 %v138
    %v206 = vpop.f32.mrf.mxu0
    %v207 = vadd.f32 0.0, %v206
    %v208 = vpop.f32.mrf.mxu0
    %209 = vdwg.mxu0
    %v210 = vld [vmem:[#allocation2] sm:$0xff]
    %v211 = vadd.f32 %v210, %v207
    %212 = vst.msk [vmem:[#allocation2] sm:$0xff] %vm125, %v211
    %v213 = vld [vmem:[%s4] sm:$0xff]
    %v214 = vld [vmem:[#allocation2] sm:$0xff]
    %v215 = vadd.f32 %v214, %v213
    %216 = vst.msk [vmem:[#allocation2] sm:$0xff] %vm125, %v215
    // Predicated region
    $region22: #{tpu_custom_call.1} parent=1 // pred_check
      _
    $region23: #{tpu_custom_call.1} parent=1 // pred_check_branch
      %218 = sbr.rel (0) target = $region25
    $region24: #{tpu_custom_call.1} parent=1 // pred_region
      %s220 = ssub.s32 128, 128
      %221 = vsyncadd [#allocation3], %s220
      %s223 = sshll.u32 [#allocation2], 4
      %s224 = int_to_ptr.vmem [resolvable:$true] %s223
      %226 = dma.vmem_to_hbm [thread:$0]  %s224, 128, %s5, [#allocation3]
    $region25: #{tpu_custom_call.1} parent=1 // pred_fallthru
      _
    // Predicated region
    $region26: #{tpu_custom_call.1} parent=1 // pred_check
      _
    $region27: #{tpu_custom_call.1} parent=1 // pred_check_branch
      %228 = sbr.rel (0) target = $region29
    $region28: #{tpu_custom_call.1} parent=1 // pred_region
      %229 = dma.done [#allocation3], 128
    $region29: #{tpu_custom_call.1} parent=1 // pred_fallthru
      _
    %230 = vsyncpa [#allocation3], 1

</llo_original>
